<compile_context>
chip_gen: v5e
topology: v5e:2x2
jax: 0.10.0
libtpu: 0.0.40
codegen_flags: <defaults>
</compile_context>

<pallas_src>
import jax
import jax.numpy as jnp
from jax.experimental import pallas as pl
from jax.experimental.pallas import tpu as pltpu


# ------------------- fused gather + LSTM + hidden2tag kernel ------------------
def _make_fused_kernel(S, Bp, V, E, H, Tp):
    """Single-program kernel.

    Refs (whole arrays, VMEM):
      tok_ref  [S*Bp, 1]  int32   time-major padded token ids
      emb_ref  [V, E]     bf16    embedding table
      wih_ref  [E, 4H]    bf16
      whh_ref  [H, 4H]    bf16
      b_ref    [1, 4H]    f32     (b_ih + b_hh folded)
      h0_ref   [Bp, H]    f32
      c0_ref   [Bp, H]    f32
      wtag_ref [H, Tp]    bf16    zero-padded to Tp=128 lanes
      btag_ref [1, Tp]    f32     zero-padded
      out_ref  [S*Bp, Tp] f32     time-major tag scores (lane-dense)
      h_all    [S*Bp, H]  f32     VMEM scratch collecting every h_t
    """

    def kernel(tok_ref, emb_ref, wih_ref, whh_ref, b_ref, h0_ref, c0_ref,
               wtag_ref, btag_ref, out_ref, h_all):
        # ---- in-kernel embedding gather: one-hot MXU matmul (off the chain) --
        tok = tok_ref[...]                                            # [S*Bp, 1]
        vocab_iota = jax.lax.broadcasted_iota(jnp.int32, (S * Bp, V), 1)
        one_hot = (vocab_iota == tok).astype(jnp.bfloat16)            # [S*Bp, V]
        x = jnp.dot(one_hot, emb_ref[...],
                    preferred_element_type=jnp.float32)               # [S*Bp, E]

        # ---- hoisted input projection: one matmul covers every timestep ------
        gates_x = jnp.dot(x.astype(jnp.bfloat16), wih_ref[...],
                          preferred_element_type=jnp.float32) + b_ref[...]  # [S*Bp, 4H]

        w_hh = whh_ref[...]                                           # bf16 [H, 4H]

        # Lane mask for the tanh gate 'g' (PyTorch gate order i, f, g, o),
        # hoisted out of the loop (broadcasts are not CSE'd).
        lane = jax.lax.broadcasted_iota(jnp.int32, (Bp, 4 * H), 1)
        g_lane = (lane >= 2 * H) & (lane < 3 * H)

        h = h0_ref[...]                                               # f32 [Bp, H]
        c = c0_ref[...]                                               # f32 [Bp, H]

        # S is small and static -> fully unrolled; h/c stay in vregs.  Only the
        # h @ W_hh matmul, one tanh pass, one tanh(c) and the elementwise
        # combine remain on the serial chain.
        for t in range(S):
            gates = gates_x[t * Bp:(t + 1) * Bp, :] + jnp.dot(
                h.astype(jnp.bfloat16), w_hh,
                preferred_element_type=jnp.float32)                   # [Bp, 4H]
            # Single-EUP activation: sigmoid(x) = 0.5*(1 + tanh(x/2)).
            g2 = jnp.where(g_lane, gates, 0.5 * gates)
            tnh = jnp.tanh(g2)
            act = jnp.where(g_lane, tnh, 0.5 * tnh + 0.5)
            i_g = act[:, 0 * H:1 * H]
            f_g = act[:, 1 * H:2 * H]
            g_g = act[:, 2 * H:3 * H]
            o_g = act[:, 3 * H:4 * H]
            c = f_g * c + i_g * g_g
            h = o_g * jnp.tanh(c)
            h_all[t * Bp:(t + 1) * Bp, :] = h          # VMEM scratch, off-chain

        # ---- batched hidden2tag epilogue: ONE matmul + lane-dense store ------
        tags = jnp.dot(h_all[...].astype(jnp.bfloat16), wtag_ref[...],
                       preferred_element_type=jnp.float32) + btag_ref[...]
        out_ref[...] = tags                                           # [S*Bp, Tp]

    return kernel


def lstm_tag_pallas(tok_col, emb_bf16, w_ih, w_hh, b_lstm, h0, c0,
                    w_tag_p, b_tag_p):
    """tok_col [S*Bp,1] int32, bf16 weights, f32 biases/state -> [S*Bp,Tp] f32."""
    SBp = tok_col.shape[0]
    Bp, H = h0.shape
    S = SBp // Bp
    V, E = emb_bf16.shape
    Tp = w_tag_p.shape[1]
    # No grid, no BlockSpecs: single program, all operands whole-array
    # VMEM-resident (total working set << VMEM on v5e/v6e/v7x).
    return pl.pallas_call(
        _make_fused_kernel(S, Bp, V, E, H, Tp),
        out_shape=jax.ShapeDtypeStruct((SBp, Tp), jnp.float32),
        scratch_shapes=[pltpu.VMEM((SBp, H), jnp.float32)],
    )(tok_col, emb_bf16, w_ih, w_hh, b_lstm, h0, c0, w_tag_p, b_tag_p)


# ------------------------------- full forward ---------------------------------
def sentence_module_forward(tokens, params, key_hidden):
    """tokens [B, S] int32 -> tag scores [B, S, tagset_size]."""
    B, S = tokens.shape
    H = params["w_hh"].shape[0]
    T = params["w_tag"].shape[1]
    Bp = ((B + 7) // 8) * 8          # pad batch to the native 8-row sublane tile
    Tp = 128                          # lane-dense padded tag width

    # Tiny int prologue (256 B): pad batch, go time-major.  The embedding
    # gather + input projection themselves run inside the kernel.
    tokens_p = jnp.zeros((Bp, S), jnp.int32).at[:B, :].set(tokens)
    tok_col = tokens_p.T.reshape(S * Bp, 1)                    # [S*Bp, 1]

    # Random initial hidden state (torch.rand equivalent); padded rows are zero
    # and their outputs are sliced away.
    kh, kc = jax.random.split(key_hidden)
    h0 = jax.random.uniform(kh, (B, H), dtype=jnp.float32)
    c0 = jax.random.uniform(kc, (B, H), dtype=jnp.float32)
    h0p = jnp.zeros((Bp, H), jnp.float32).at[:B].set(h0)
    c0p = jnp.zeros((Bp, H), jnp.float32).at[:B].set(c0)

    # bf16 MXU operands, f32 accumulation inside the kernel.
    emb_bf16 = params["embedding"].astype(jnp.bfloat16)
    w_ih = params["w_ih"].astype(jnp.bfloat16)
    w_hh = params["w_hh"].astype(jnp.bfloat16)
    # Zero-pad tag weights/bias to 128 output lanes -> unmasked lane-dense store.
    w_tag_p = jnp.zeros((H, Tp), jnp.bfloat16).at[:, :T].set(
        params["w_tag"].astype(jnp.bfloat16))
    b_tag_p = jnp.zeros((1, Tp), jnp.float32).at[:, :T].set(params["b_tag"])

    tags_tm = lstm_tag_pallas(tok_col, emb_bf16, w_ih, w_hh, params["b_lstm"],
                              h0p, c0p, w_tag_p, b_tag_p)      # [S*Bp, Tp]

    # Un-pad (batch rows and tag lanes) and go back to batch-major; only this
    # small f32 slab is touched in XLA after the kernel.
    tags = tags_tm.reshape(S, Bp, Tp)[:, :B, :T]
    return jnp.transpose(tags, (1, 0, 2))                      # [B, S, T]


# -------------------------------- reference -----------------------------------
def reference_forward(tokens, params, key_hidden):
    """Pure-JAX reference mirroring the module semantics (and the kernel's
    bf16-operand / f32-accumulation matmuls; uses exact jax.nn.sigmoid)."""
    emb = params["embedding"]
    B, S = tokens.shape
    H = params["w_hh"].shape[0]
    T = params["w_tag"].shape[1]

    x = jnp.take(emb, tokens, axis=0)                      # [B, S, E]
    kh, kc = jax.random.split(key_hidden)
    h0 = jax.random.uniform(kh, (B, H), dtype=jnp.float32)
    c0 = jax.random.uniform(kc, (B, H), dtype=jnp.float32)

    w_ih = params["w_ih"].astype(jnp.bfloat16)
    w_hh = params["w_hh"].astype(jnp.bfloat16)
    w_tag = params["w_tag"].astype(jnp.bfloat16)
    b = params["b_lstm"]

    def step(carry, x_t):
        h, c = carry
        gates = (jnp.dot(x_t.astype(jnp.bfloat16), w_ih,
                         preferred_element_type=jnp.float32)
                 + jnp.dot(h.astype(jnp.bfloat16), w_hh,
                           preferred_element_type=jnp.float32)
                 + b)
        i = jax.nn.sigmoid(gates[:, 0 * H:1 * H])
        f = jax.nn.sigmoid(gates[:, 1 * H:2 * H])
        g = jnp.tanh(gates[:, 2 * H:3 * H])
        o = jax.nn.sigmoid(gates[:, 3 * H:4 * H])
        c = f * c + i * g
        h = o * jnp.tanh(c)
        return (h, c), h

    _, hs = jax.lax.scan(step, (h0, c0), jnp.transpose(x, (1, 0, 2)))  # [S, B, H]
    h_bs = jnp.transpose(hs, (1, 0, 2)).reshape(B * S, H)              # [B*S, H]
    tags = (jnp.dot(h_bs.astype(jnp.bfloat16), w_tag,
                    preferred_element_type=jnp.float32)
            + params["b_tag"]).reshape(B, S, T)
    return tags


# ----------------------------------- main --------------------------------------
if __name__ == "__main__":
    vocab_size, embedding_size, hidden_size, tagset_size = 50, 32, 32, 8
    batch, seq = 2, 8

    key = jax.random.PRNGKey(0)
    k_emb, k_wih, k_whh, k_b, k_wt, k_bt, k_tok, k_hid = jax.random.split(key, 8)

    scale = 1.0 / jnp.sqrt(hidden_size)
    params = {
        "embedding": jax.random.normal(k_emb, (vocab_size, embedding_size),
                                       dtype=jnp.float32),
        # pre-transposed: [E, 4H] / [H, 4H]; bias = b_ih + b_hh folded, [1, 4H]
        "w_ih": jax.random.uniform(k_wih, (embedding_size, 4 * hidden_size),
                                   minval=-scale, maxval=scale, dtype=jnp.float32),
        "w_hh": jax.random.uniform(k_whh, (hidden_size, 4 * hidden_size),
                                   minval=-scale, maxval=scale, dtype=jnp.float32),
        "b_lstm": jax.random.uniform(k_b, (1, 4 * hidden_size),
                                     minval=-scale, maxval=scale, dtype=jnp.float32),
        "w_tag": jax.random.uniform(k_wt, (hidden_size, tagset_size),
                                    minval=-scale, maxval=scale, dtype=jnp.float32),
        "b_tag": jax.random.uniform(k_bt, (1, tagset_size),
                                    minval=-scale, maxval=scale, dtype=jnp.float32),
    }

    tokens = jax.random.randint(k_tok, (batch, seq), 0, vocab_size, dtype=jnp.int32)

    # TODO(synk): torch.rand initial hidden state is emulated with
    # jax.random.uniform (no bitwise-identical RNG equivalent to PyTorch).
    fwd = jax.jit(sentence_module_forward)
    out = fwd(tokens, params, k_hid)
    out = jax.block_until_ready(out)
    assert out.shape == (batch, seq, tagset_size), out.shape

    ref = reference_forward(tokens, params, k_hid)
    max_diff = float(jnp.max(jnp.abs(out - ref)))
    assert jnp.allclose(out, ref, atol=1e-3, rtol=1e-3), max_diff

    print("KERNEL_OK")
</pallas_src>

<mosaic_0001>
module attributes {stable_mosaic.version = 11 : i64} {
  func.func @kernel(%arg0: memref<64x1xi32, #tpu.memory_space<vmem>>, %arg1: memref<50x32xbf16, #tpu.memory_space<vmem>>, %arg2: memref<32x128xbf16, #tpu.memory_space<vmem>>, %arg3: memref<32x128xbf16, #tpu.memory_space<vmem>>, %arg4: memref<1x128xf32, #tpu.memory_space<vmem>>, %arg5: memref<8x32xf32, #tpu.memory_space<vmem>>, %arg6: memref<8x32xf32, #tpu.memory_space<vmem>>, %arg7: memref<32x128xbf16, #tpu.memory_space<vmem>>, %arg8: memref<1x128xf32, #tpu.memory_space<vmem>>, %arg9: memref<64x128xf32, #tpu.memory_space<vmem>>, %arg10: memref<64x32xf32, #tpu.memory_space<vmem>>) attributes {dimension_semantics = [], scalar_prefetch = 0 : i64, scratch_operands = 1 : i64, tpu.core_type = #tpu.core_type<tc>} {
    %c0 = arith.constant 0 : index
    %c0_0 = arith.constant 0 : index
    %0 = vector.load %arg0[%c0, %c0_0] : memref<64x1xi32, #tpu.memory_space<vmem>>, vector<64x1xi32>
    %1 = tpu.iota {dimensions = array<i32: 1>} : vector<64x50xi32>
    %2 = vector.broadcast %0 : vector<64x1xi32> to vector<64x50xi32>
    %3 = arith.cmpi eq, %1, %2 : vector<64x50xi32>
    %4 = arith.extui %3 : vector<64x50xi1> to vector<64x50xi32>
    %5 = arith.sitofp %4 : vector<64x50xi32> to vector<64x50xf32>
    %6 = arith.truncf %5 : vector<64x50xf32> to vector<64x50xbf16>
    %c0_1 = arith.constant 0 : index
    %c0_2 = arith.constant 0 : index
    %7 = vector.load %arg1[%c0_1, %c0_2] : memref<50x32xbf16, #tpu.memory_space<vmem>>, vector<50x32xbf16>
    %cst = arith.constant dense<0.000000e+00> : vector<64x32xf32>
    %8 = tpu.matmul %6, %7, %cst {dimension_numbers = #tpu.dot_dimension_numbers<[1], [0], [0], [1], [0, 0, 1, 1], [], []>} : vector<64x50xbf16>, vector<50x32xbf16>, vector<64x32xf32> -> vector<64x32xf32>
    %9 = arith.truncf %8 : vector<64x32xf32> to vector<64x32xbf16>
    %c0_3 = arith.constant 0 : index
    %c0_4 = arith.constant 0 : index
    %10 = vector.load %arg2[%c0_3, %c0_4] : memref<32x128xbf16, #tpu.memory_space<vmem>>, vector<32x128xbf16>
    %cst_5 = arith.constant dense<0.000000e+00> : vector<64x128xf32>
    %11 = tpu.matmul %9, %10, %cst_5 {dimension_numbers = #tpu.dot_dimension_numbers<[1], [0], [0], [1], [0, 0, 1, 1], [], []>} : vector<64x32xbf16>, vector<32x128xbf16>, vector<64x128xf32> -> vector<64x128xf32>
    %c0_6 = arith.constant 0 : index
    %c0_7 = arith.constant 0 : index
    %12 = vector.load %arg4[%c0_6, %c0_7] : memref<1x128xf32, #tpu.memory_space<vmem>>, vector<1x128xf32>
    %13 = vector.broadcast %12 : vector<1x128xf32> to vector<64x128xf32>
    %14 = arith.addf %11, %13 : vector<64x128xf32>
    %c0_8 = arith.constant 0 : index
    %c0_9 = arith.constant 0 : index
    %15 = vector.load %arg3[%c0_8, %c0_9] : memref<32x128xbf16, #tpu.memory_space<vmem>>, vector<32x128xbf16>
    %16 = tpu.iota {dimensions = array<i32: 1>} : vector<8x128xi32>
    %c64_i32 = arith.constant 64 : i32
    %17 = vector.broadcast %c64_i32 : i32 to vector<8x128xi32>
    %18 = arith.cmpi sge, %16, %17 : vector<8x128xi32>
    %c96_i32 = arith.constant 96 : i32
    %19 = vector.broadcast %c96_i32 : i32 to vector<8x128xi32>
    %20 = arith.cmpi slt, %16, %19 : vector<8x128xi32>
    %21 = arith.andi %18, %20 : vector<8x128xi1>
    %c0_10 = arith.constant 0 : index
    %c0_11 = arith.constant 0 : index
    %22 = vector.load %arg5[%c0_10, %c0_11] : memref<8x32xf32, #tpu.memory_space<vmem>>, vector<8x32xf32>
    %c0_12 = arith.constant 0 : index
    %c0_13 = arith.constant 0 : index
    %23 = vector.load %arg6[%c0_12, %c0_13] : memref<8x32xf32, #tpu.memory_space<vmem>>, vector<8x32xf32>
    %24 = vector.extract_strided_slice %14 {offsets = [0, 0], sizes = [8, 128], strides = [1, 1]} : vector<64x128xf32> to vector<8x128xf32>
    %25 = arith.truncf %22 : vector<8x32xf32> to vector<8x32xbf16>
    %cst_14 = arith.constant dense<0.000000e+00> : vector<8x128xf32>
    %26 = tpu.matmul %25, %15, %cst_14 {dimension_numbers = #tpu.dot_dimension_numbers<[1], [0], [0], [1], [0, 0, 1, 1], [], []>} : vector<8x32xbf16>, vector<32x128xbf16>, vector<8x128xf32> -> vector<8x128xf32>
    %27 = arith.addf %24, %26 : vector<8x128xf32>
    %cst_15 = arith.constant 5.000000e-01 : f32
    %28 = vector.broadcast %cst_15 : f32 to vector<8x128xf32>
    %29 = arith.mulf %28, %27 : vector<8x128xf32>
    %30 = arith.select %21, %27, %29 : vector<8x128xi1>, vector<8x128xf32>
    %31 = math.tanh %30 : vector<8x128xf32>
    %cst_16 = arith.constant 5.000000e-01 : f32
    %32 = vector.broadcast %cst_16 : f32 to vector<8x128xf32>
    %33 = arith.mulf %32, %31 : vector<8x128xf32>
    %cst_17 = arith.constant 5.000000e-01 : f32
    %34 = vector.broadcast %cst_17 : f32 to vector<8x128xf32>
    %35 = arith.addf %33, %34 : vector<8x128xf32>
    %36 = arith.select %21, %31, %35 : vector<8x128xi1>, vector<8x128xf32>
    %37 = vector.extract_strided_slice %36 {offsets = [0, 0], sizes = [8, 32], strides = [1, 1]} : vector<8x128xf32> to vector<8x32xf32>
    %38 = vector.extract_strided_slice %36 {offsets = [0, 32], sizes = [8, 32], strides = [1, 1]} : vector<8x128xf32> to vector<8x32xf32>
    %39 = vector.extract_strided_slice %36 {offsets = [0, 64], sizes = [8, 32], strides = [1, 1]} : vector<8x128xf32> to vector<8x32xf32>
    %40 = vector.extract_strided_slice %36 {offsets = [0, 96], sizes = [8, 32], strides = [1, 1]} : vector<8x128xf32> to vector<8x32xf32>
    %41 = arith.mulf %38, %23 : vector<8x32xf32>
    %42 = arith.mulf %37, %39 : vector<8x32xf32>
    %43 = arith.addf %41, %42 : vector<8x32xf32>
    %44 = math.tanh %43 : vector<8x32xf32>
    %45 = arith.mulf %40, %44 : vector<8x32xf32>
    %c0_18 = arith.constant 0 : index
    %c0_19 = arith.constant 0 : index
    %46 = vector.load %arg10[%c0_18, %c0_19] : memref<64x32xf32, #tpu.memory_space<vmem>>, vector<8x32xf32>
    tpu.vector_store %arg10[%c0_18, %c0_19], %45 {strides = array<i32>} : memref<64x32xf32, #tpu.memory_space<vmem>>, vector<8x32xf32>,
    %47 = vector.extract_strided_slice %14 {offsets = [8, 0], sizes = [8, 128], strides = [1, 1]} : vector<64x128xf32> to vector<8x128xf32>
    %48 = arith.truncf %45 : vector<8x32xf32> to vector<8x32xbf16>
    %cst_20 = arith.constant dense<0.000000e+00> : vector<8x128xf32>
    %49 = tpu.matmul %48, %15, %cst_20 {dimension_numbers = #tpu.dot_dimension_numbers<[1], [0], [0], [1], [0, 0, 1, 1], [], []>} : vector<8x32xbf16>, vector<32x128xbf16>, vector<8x128xf32> -> vector<8x128xf32>
    %50 = arith.addf %47, %49 : vector<8x128xf32>
    %cst_21 = arith.constant 5.000000e-01 : f32
    %51 = vector.broadcast %cst_21 : f32 to vector<8x128xf32>
    %52 = arith.mulf %51, %50 : vector<8x128xf32>
    %53 = arith.select %21, %50, %52 : vector<8x128xi1>, vector<8x128xf32>
    %54 = math.tanh %53 : vector<8x128xf32>
    %cst_22 = arith.constant 5.000000e-01 : f32
    %55 = vector.broadcast %cst_22 : f32 to vector<8x128xf32>
    %56 = arith.mulf %55, %54 : vector<8x128xf32>
    %cst_23 = arith.constant 5.000000e-01 : f32
    %57 = vector.broadcast %cst_23 : f32 to vector<8x128xf32>
    %58 = arith.addf %56, %57 : vector<8x128xf32>
    %59 = arith.select %21, %54, %58 : vector<8x128xi1>, vector<8x128xf32>
    %60 = vector.extract_strided_slice %59 {offsets = [0, 0], sizes = [8, 32], strides = [1, 1]} : vector<8x128xf32> to vector<8x32xf32>
    %61 = vector.extract_strided_slice %59 {offsets = [0, 32], sizes = [8, 32], strides = [1, 1]} : vector<8x128xf32> to vector<8x32xf32>
    %62 = vector.extract_strided_slice %59 {offsets = [0, 64], sizes = [8, 32], strides = [1, 1]} : vector<8x128xf32> to vector<8x32xf32>
    %63 = vector.extract_strided_slice %59 {offsets = [0, 96], sizes = [8, 32], strides = [1, 1]} : vector<8x128xf32> to vector<8x32xf32>
    %64 = arith.mulf %61, %43 : vector<8x32xf32>
    %65 = arith.mulf %60, %62 : vector<8x32xf32>
    %66 = arith.addf %64, %65 : vector<8x32xf32>
    %67 = math.tanh %66 : vector<8x32xf32>
    %68 = arith.mulf %63, %67 : vector<8x32xf32>
    %c8 = arith.constant 8 : index
    %c0_24 = arith.constant 0 : index
    %69 = vector.load %arg10[%c8, %c0_24] : memref<64x32xf32, #tpu.memory_space<vmem>>, vector<8x32xf32>
    tpu.vector_store %arg10[%c8, %c0_24], %68 {strides = array<i32>} : memref<64x32xf32, #tpu.memory_space<vmem>>, vector<8x32xf32>,
    %70 = vector.extract_strided_slice %14 {offsets = [16, 0], sizes = [8, 128], strides = [1, 1]} : vector<64x128xf32> to vector<8x128xf32>
    %71 = arith.truncf %68 : vector<8x32xf32> to vector<8x32xbf16>
    %cst_25 = arith.constant dense<0.000000e+00> : vector<8x128xf32>
    %72 = tpu.matmul %71, %15, %cst_25 {dimension_numbers = #tpu.dot_dimension_numbers<[1], [0], [0], [1], [0, 0, 1, 1], [], []>} : vector<8x32xbf16>, vector<32x128xbf16>, vector<8x128xf32> -> vector<8x128xf32>
    %73 = arith.addf %70, %72 : vector<8x128xf32>
    %cst_26 = arith.constant 5.000000e-01 : f32
    %74 = vector.broadcast %cst_26 : f32 to vector<8x128xf32>
    %75 = arith.mulf %74, %73 : vector<8x128xf32>
    %76 = arith.select %21, %73, %75 : vector<8x128xi1>, vector<8x128xf32>
    %77 = math.tanh %76 : vector<8x128xf32>
    %cst_27 = arith.constant 5.000000e-01 : f32
    %78 = vector.broadcast %cst_27 : f32 to vector<8x128xf32>
    %79 = arith.mulf %78, %77 : vector<8x128xf32>
    %cst_28 = arith.constant 5.000000e-01 : f32
    %80 = vector.broadcast %cst_28 : f32 to vector<8x128xf32>
    %81 = arith.addf %79, %80 : vector<8x128xf32>
    %82 = arith.select %21, %77, %81 : vector<8x128xi1>, vector<8x128xf32>
    %83 = vector.extract_strided_slice %82 {offsets = [0, 0], sizes = [8, 32], strides = [1, 1]} : vector<8x128xf32> to vector<8x32xf32>
    %84 = vector.extract_strided_slice %82 {offsets = [0, 32], sizes = [8, 32], strides = [1, 1]} : vector<8x128xf32> to vector<8x32xf32>
    %85 = vector.extract_strided_slice %82 {offsets = [0, 64], sizes = [8, 32], strides = [1, 1]} : vector<8x128xf32> to vector<8x32xf32>
    %86 = vector.extract_strided_slice %82 {offsets = [0, 96], sizes = [8, 32], strides = [1, 1]} : vector<8x128xf32> to vector<8x32xf32>
    %87 = arith.mulf %84, %66 : vector<8x32xf32>
    %88 = arith.mulf %83, %85 : vector<8x32xf32>
    %89 = arith.addf %87, %88 : vector<8x32xf32>
    %90 = math.tanh %89 : vector<8x32xf32>
    %91 = arith.mulf %86, %90 : vector<8x32xf32>
    %c16 = arith.constant 16 : index
    %c0_29 = arith.constant 0 : index
    %92 = vector.load %arg10[%c16, %c0_29] : memref<64x32xf32, #tpu.memory_space<vmem>>, vector<8x32xf32>
    tpu.vector_store %arg10[%c16, %c0_29], %91 {strides = array<i32>} : memref<64x32xf32, #tpu.memory_space<vmem>>, vector<8x32xf32>,
    %93 = vector.extract_strided_slice %14 {offsets = [24, 0], sizes = [8, 128], strides = [1, 1]} : vector<64x128xf32> to vector<8x128xf32>
    %94 = arith.truncf %91 : vector<8x32xf32> to vector<8x32xbf16>
    %cst_30 = arith.constant dense<0.000000e+00> : vector<8x128xf32>
    %95 = tpu.matmul %94, %15, %cst_30 {dimension_numbers = #tpu.dot_dimension_numbers<[1], [0], [0], [1], [0, 0, 1, 1], [], []>} : vector<8x32xbf16>, vector<32x128xbf16>, vector<8x128xf32> -> vector<8x128xf32>
    %96 = arith.addf %93, %95 : vector<8x128xf32>
    %cst_31 = arith.constant 5.000000e-01 : f32
    %97 = vector.broadcast %cst_31 : f32 to vector<8x128xf32>
    %98 = arith.mulf %97, %96 : vector<8x128xf32>
    %99 = arith.select %21, %96, %98 : vector<8x128xi1>, vector<8x128xf32>
    %100 = math.tanh %99 : vector<8x128xf32>
    %cst_32 = arith.constant 5.000000e-01 : f32
    %101 = vector.broadcast %cst_32 : f32 to vector<8x128xf32>
    %102 = arith.mulf %101, %100 : vector<8x128xf32>
    %cst_33 = arith.constant 5.000000e-01 : f32
    %103 = vector.broadcast %cst_33 : f32 to vector<8x128xf32>
    %104 = arith.addf %102, %103 : vector<8x128xf32>
    %105 = arith.select %21, %100, %104 : vector<8x128xi1>, vector<8x128xf32>
    %106 = vector.extract_strided_slice %105 {offsets = [0, 0], sizes = [8, 32], strides = [1, 1]} : vector<8x128xf32> to vector<8x32xf32>
    %107 = vector.extract_strided_slice %105 {offsets = [0, 32], sizes = [8, 32], strides = [1, 1]} : vector<8x128xf32> to vector<8x32xf32>
    %108 = vector.extract_strided_slice %105 {offsets = [0, 64], sizes = [8, 32], strides = [1, 1]} : vector<8x128xf32> to vector<8x32xf32>
    %109 = vector.extract_strided_slice %105 {offsets = [0, 96], sizes = [8, 32], strides = [1, 1]} : vector<8x128xf32> to vector<8x32xf32>
    %110 = arith.mulf %107, %89 : vector<8x32xf32>
    %111 = arith.mulf %106, %108 : vector<8x32xf32>
    %112 = arith.addf %110, %111 : vector<8x32xf32>
    %113 = math.tanh %112 : vector<8x32xf32>
    %114 = arith.mulf %109, %113 : vector<8x32xf32>
    %c24 = arith.constant 24 : index
    %c0_34 = arith.constant 0 : index
    %115 = vector.load %arg10[%c24, %c0_34] : memref<64x32xf32, #tpu.memory_space<vmem>>, vector<8x32xf32>
    tpu.vector_store %arg10[%c24, %c0_34], %114 {strides = array<i32>} : memref<64x32xf32, #tpu.memory_space<vmem>>, vector<8x32xf32>,
    %116 = vector.extract_strided_slice %14 {offsets = [32, 0], sizes = [8, 128], strides = [1, 1]} : vector<64x128xf32> to vector<8x128xf32>
    %117 = arith.truncf %114 : vector<8x32xf32> to vector<8x32xbf16>
    %cst_35 = arith.constant dense<0.000000e+00> : vector<8x128xf32>
    %118 = tpu.matmul %117, %15, %cst_35 {dimension_numbers = #tpu.dot_dimension_numbers<[1], [0], [0], [1], [0, 0, 1, 1], [], []>} : vector<8x32xbf16>, vector<32x128xbf16>, vector<8x128xf32> -> vector<8x128xf32>
    %119 = arith.addf %116, %118 : vector<8x128xf32>
    %cst_36 = arith.constant 5.000000e-01 : f32
    %120 = vector.broadcast %cst_36 : f32 to vector<8x128xf32>
    %121 = arith.mulf %120, %119 : vector<8x128xf32>
    %122 = arith.select %21, %119, %121 : vector<8x128xi1>, vector<8x128xf32>
    %123 = math.tanh %122 : vector<8x128xf32>
    %cst_37 = arith.constant 5.000000e-01 : f32
    %124 = vector.broadcast %cst_37 : f32 to vector<8x128xf32>
    %125 = arith.mulf %124, %123 : vector<8x128xf32>
    %cst_38 = arith.constant 5.000000e-01 : f32
    %126 = vector.broadcast %cst_38 : f32 to vector<8x128xf32>
    %127 = arith.addf %125, %126 : vector<8x128xf32>
    %128 = arith.select %21, %123, %127 : vector<8x128xi1>, vector<8x128xf32>
    %129 = vector.extract_strided_slice %128 {offsets = [0, 0], sizes = [8, 32], strides = [1, 1]} : vector<8x128xf32> to vector<8x32xf32>
    %130 = vector.extract_strided_slice %128 {offsets = [0, 32], sizes = [8, 32], strides = [1, 1]} : vector<8x128xf32> to vector<8x32xf32>
    %131 = vector.extract_strided_slice %128 {offsets = [0, 64], sizes = [8, 32], strides = [1, 1]} : vector<8x128xf32> to vector<8x32xf32>
    %132 = vector.extract_strided_slice %128 {offsets = [0, 96], sizes = [8, 32], strides = [1, 1]} : vector<8x128xf32> to vector<8x32xf32>
    %133 = arith.mulf %130, %112 : vector<8x32xf32>
    %134 = arith.mulf %129, %131 : vector<8x32xf32>
    %135 = arith.addf %133, %134 : vector<8x32xf32>
    %136 = math.tanh %135 : vector<8x32xf32>
    %137 = arith.mulf %132, %136 : vector<8x32xf32>
    %c32 = arith.constant 32 : index
    %c0_39 = arith.constant 0 : index
    %138 = vector.load %arg10[%c32, %c0_39] : memref<64x32xf32, #tpu.memory_space<vmem>>, vector<8x32xf32>
    tpu.vector_store %arg10[%c32, %c0_39], %137 {strides = array<i32>} : memref<64x32xf32, #tpu.memory_space<vmem>>, vector<8x32xf32>,
    %139 = vector.extract_strided_slice %14 {offsets = [40, 0], sizes = [8, 128], strides = [1, 1]} : vector<64x128xf32> to vector<8x128xf32>
    %140 = arith.truncf %137 : vector<8x32xf32> to vector<8x32xbf16>
    %cst_40 = arith.constant dense<0.000000e+00> : vector<8x128xf32>
    %141 = tpu.matmul %140, %15, %cst_40 {dimension_numbers = #tpu.dot_dimension_numbers<[1], [0], [0], [1], [0, 0, 1, 1], [], []>} : vector<8x32xbf16>, vector<32x128xbf16>, vector<8x128xf32> -> vector<8x128xf32>
    %142 = arith.addf %139, %141 : vector<8x128xf32>
    %cst_41 = arith.constant 5.000000e-01 : f32
    %143 = vector.broadcast %cst_41 : f32 to vector<8x128xf32>
    %144 = arith.mulf %143, %142 : vector<8x128xf32>
    %145 = arith.select %21, %142, %144 : vector<8x128xi1>, vector<8x128xf32>
    %146 = math.tanh %145 : vector<8x128xf32>
    %cst_42 = arith.constant 5.000000e-01 : f32
    %147 = vector.broadcast %cst_42 : f32 to vector<8x128xf32>
    %148 = arith.mulf %147, %146 : vector<8x128xf32>
    %cst_43 = arith.constant 5.000000e-01 : f32
    %149 = vector.broadcast %cst_43 : f32 to vector<8x128xf32>
    %150 = arith.addf %148, %149 : vector<8x128xf32>
    %151 = arith.select %21, %146, %150 : vector<8x128xi1>, vector<8x128xf32>
    %152 = vector.extract_strided_slice %151 {offsets = [0, 0], sizes = [8, 32], strides = [1, 1]} : vector<8x128xf32> to vector<8x32xf32>
    %153 = vector.extract_strided_slice %151 {offsets = [0, 32], sizes = [8, 32], strides = [1, 1]} : vector<8x128xf32> to vector<8x32xf32>
    %154 = vector.extract_strided_slice %151 {offsets = [0, 64], sizes = [8, 32], strides = [1, 1]} : vector<8x128xf32> to vector<8x32xf32>
    %155 = vector.extract_strided_slice %151 {offsets = [0, 96], sizes = [8, 32], strides = [1, 1]} : vector<8x128xf32> to vector<8x32xf32>
    %156 = arith.mulf %153, %135 : vector<8x32xf32>
    %157 = arith.mulf %152, %154 : vector<8x32xf32>
    %158 = arith.addf %156, %157 : vector<8x32xf32>
    %159 = math.tanh %158 : vector<8x32xf32>
    %160 = arith.mulf %155, %159 : vector<8x32xf32>
    %c40 = arith.constant 40 : index
    %c0_44 = arith.constant 0 : index
    %161 = vector.load %arg10[%c40, %c0_44] : memref<64x32xf32, #tpu.memory_space<vmem>>, vector<8x32xf32>
    tpu.vector_store %arg10[%c40, %c0_44], %160 {strides = array<i32>} : memref<64x32xf32, #tpu.memory_space<vmem>>, vector<8x32xf32>,
    %162 = vector.extract_strided_slice %14 {offsets = [48, 0], sizes = [8, 128], strides = [1, 1]} : vector<64x128xf32> to vector<8x128xf32>
    %163 = arith.truncf %160 : vector<8x32xf32> to vector<8x32xbf16>
    %cst_45 = arith.constant dense<0.000000e+00> : vector<8x128xf32>
    %164 = tpu.matmul %163, %15, %cst_45 {dimension_numbers = #tpu.dot_dimension_numbers<[1], [0], [0], [1], [0, 0, 1, 1], [], []>} : vector<8x32xbf16>, vector<32x128xbf16>, vector<8x128xf32> -> vector<8x128xf32>
    %165 = arith.addf %162, %164 : vector<8x128xf32>
    %cst_46 = arith.constant 5.000000e-01 : f32
    %166 = vector.broadcast %cst_46 : f32 to vector<8x128xf32>
    %167 = arith.mulf %166, %165 : vector<8x128xf32>
    %168 = arith.select %21, %165, %167 : vector<8x128xi1>, vector<8x128xf32>
    %169 = math.tanh %168 : vector<8x128xf32>
    %cst_47 = arith.constant 5.000000e-01 : f32
    %170 = vector.broadcast %cst_47 : f32 to vector<8x128xf32>
    %171 = arith.mulf %170, %169 : vector<8x128xf32>
    %cst_48 = arith.constant 5.000000e-01 : f32
    %172 = vector.broadcast %cst_48 : f32 to vector<8x128xf32>
    %173 = arith.addf %171, %172 : vector<8x128xf32>
    %174 = arith.select %21, %169, %173 : vector<8x128xi1>, vector<8x128xf32>
    %175 = vector.extract_strided_slice %174 {offsets = [0, 0], sizes = [8, 32], strides = [1, 1]} : vector<8x128xf32> to vector<8x32xf32>
    %176 = vector.extract_strided_slice %174 {offsets = [0, 32], sizes = [8, 32], strides = [1, 1]} : vector<8x128xf32> to vector<8x32xf32>
    %177 = vector.extract_strided_slice %174 {offsets = [0, 64], sizes = [8, 32], strides = [1, 1]} : vector<8x128xf32> to vector<8x32xf32>
    %178 = vector.extract_strided_slice %174 {offsets = [0, 96], sizes = [8, 32], strides = [1, 1]} : vector<8x128xf32> to vector<8x32xf32>
    %179 = arith.mulf %176, %158 : vector<8x32xf32>
    %180 = arith.mulf %175, %177 : vector<8x32xf32>
    %181 = arith.addf %179, %180 : vector<8x32xf32>
    %182 = math.tanh %181 : vector<8x32xf32>
    %183 = arith.mulf %178, %182 : vector<8x32xf32>
    %c48 = arith.constant 48 : index
    %c0_49 = arith.constant 0 : index
    %184 = vector.load %arg10[%c48, %c0_49] : memref<64x32xf32, #tpu.memory_space<vmem>>, vector<8x32xf32>
    tpu.vector_store %arg10[%c48, %c0_49], %183 {strides = array<i32>} : memref<64x32xf32, #tpu.memory_space<vmem>>, vector<8x32xf32>,
    %185 = vector.extract_strided_slice %14 {offsets = [56, 0], sizes = [8, 128], strides = [1, 1]} : vector<64x128xf32> to vector<8x128xf32>
    %186 = arith.truncf %183 : vector<8x32xf32> to vector<8x32xbf16>
    %cst_50 = arith.constant dense<0.000000e+00> : vector<8x128xf32>
    %187 = tpu.matmul %186, %15, %cst_50 {dimension_numbers = #tpu.dot_dimension_numbers<[1], [0], [0], [1], [0, 0, 1, 1], [], []>} : vector<8x32xbf16>, vector<32x128xbf16>, vector<8x128xf32> -> vector<8x128xf32>
    %188 = arith.addf %185, %187 : vector<8x128xf32>
    %cst_51 = arith.constant 5.000000e-01 : f32
    %189 = vector.broadcast %cst_51 : f32 to vector<8x128xf32>
    %190 = arith.mulf %189, %188 : vector<8x128xf32>
    %191 = arith.select %21, %188, %190 : vector<8x128xi1>, vector<8x128xf32>
    %192 = math.tanh %191 : vector<8x128xf32>
    %cst_52 = arith.constant 5.000000e-01 : f32
    %193 = vector.broadcast %cst_52 : f32 to vector<8x128xf32>
    %194 = arith.mulf %193, %192 : vector<8x128xf32>
    %cst_53 = arith.constant 5.000000e-01 : f32
    %195 = vector.broadcast %cst_53 : f32 to vector<8x128xf32>
    %196 = arith.addf %194, %195 : vector<8x128xf32>
    %197 = arith.select %21, %192, %196 : vector<8x128xi1>, vector<8x128xf32>
    %198 = vector.extract_strided_slice %197 {offsets = [0, 0], sizes = [8, 32], strides = [1, 1]} : vector<8x128xf32> to vector<8x32xf32>
    %199 = vector.extract_strided_slice %197 {offsets = [0, 32], sizes = [8, 32], strides = [1, 1]} : vector<8x128xf32> to vector<8x32xf32>
    %200 = vector.extract_strided_slice %197 {offsets = [0, 64], sizes = [8, 32], strides = [1, 1]} : vector<8x128xf32> to vector<8x32xf32>
    %201 = vector.extract_strided_slice %197 {offsets = [0, 96], sizes = [8, 32], strides = [1, 1]} : vector<8x128xf32> to vector<8x32xf32>
    %202 = arith.mulf %199, %181 : vector<8x32xf32>
    %203 = arith.mulf %198, %200 : vector<8x32xf32>
    %204 = arith.addf %202, %203 : vector<8x32xf32>
    %205 = math.tanh %204 : vector<8x32xf32>
    %206 = arith.mulf %201, %205 : vector<8x32xf32>
    %c56 = arith.constant 56 : index
    %c0_54 = arith.constant 0 : index
    %207 = vector.load %arg10[%c56, %c0_54] : memref<64x32xf32, #tpu.memory_space<vmem>>, vector<8x32xf32>
    tpu.vector_store %arg10[%c56, %c0_54], %206 {strides = array<i32>} : memref<64x32xf32, #tpu.memory_space<vmem>>, vector<8x32xf32>,
    %c0_55 = arith.constant 0 : index
    %c0_56 = arith.constant 0 : index
    %208 = vector.load %arg10[%c0_55, %c0_56] : memref<64x32xf32, #tpu.memory_space<vmem>>, vector<64x32xf32>
    %209 = arith.truncf %208 : vector<64x32xf32> to vector<64x32xbf16>
    %c0_57 = arith.constant 0 : index
    %c0_58 = arith.constant 0 : index
    %210 = vector.load %arg7[%c0_57, %c0_58] : memref<32x128xbf16, #tpu.memory_space<vmem>>, vector<32x128xbf16>
    %cst_59 = arith.constant dense<0.000000e+00> : vector<64x128xf32>
    %211 = tpu.matmul %209, %210, %cst_59 {dimension_numbers = #tpu.dot_dimension_numbers<[1], [0], [0], [1], [0, 0, 1, 1], [], []>} : vector<64x32xbf16>, vector<32x128xbf16>, vector<64x128xf32> -> vector<64x128xf32>
    %c0_60 = arith.constant 0 : index
    %c0_61 = arith.constant 0 : index
    %212 = vector.load %arg8[%c0_60, %c0_61] : memref<1x128xf32, #tpu.memory_space<vmem>>, vector<1x128xf32>
    %213 = vector.broadcast %212 : vector<1x128xf32> to vector<64x128xf32>
    %214 = arith.addf %211, %213 : vector<64x128xf32>
    %c0_62 = arith.constant 0 : index
    %c0_63 = arith.constant 0 : index
    %215 = vector.load %arg9[%c0_62, %c0_63] : memref<64x128xf32, #tpu.memory_space<vmem>>, vector<64x128xf32>
    tpu.vector_store %arg9[%c0_62, %c0_63], %214 {strides = array<i32>} : memref<64x128xf32, #tpu.memory_space<vmem>>, vector<64x128xf32>,
    return
  }
}

</mosaic_0001>

<llo_original>
// kernel: sentence_module_forward.1
$region0: #{sentence_module_forward.1}
  #allocation0 [shape = 'u32[]', space=smem, size = 0x4, offset = 0x4, fixed_abs, tag = 'smem constant byte address 0x4 - core index']
  #allocation1 [shape = 'u32[72,128]{1,0:T(1,128)}', space=vmem, size = 0x9000, scoped, tag = 'internal scratch']
  #allocation2 [shape = 'f32[64,32]{1,0:T(8,128)}', space=vmem, size = 0x8000, scoped, tag = 'scratch operand']
  %s0 = inlined_call_operand.vmem [shape: s32[64,1], index: 0, kind: input, shape index: {}]
  %s1 = inlined_call_operand.vmem [shape: bf16[50,32], index: 1, kind: input, shape index: {}]
  %s2 = inlined_call_operand.vmem [shape: bf16[32,128], index: 2, kind: input, shape index: {}]
  %s3 = inlined_call_operand.vmem [shape: bf16[32,128], index: 3, kind: input, shape index: {}]
  %s4 = inlined_call_operand.vmem [shape: f32[1,128], index: 4, kind: input, shape index: {}]
  %s5 = inlined_call_operand.vmem [shape: f32[8,32], index: 5, kind: input, shape index: {}]
  %s6 = inlined_call_operand.vmem [shape: f32[8,32], index: 6, kind: input, shape index: {}]
  %s7 = inlined_call_operand.vmem [shape: bf16[32,128], index: 7, kind: input, shape index: {}]
  %s8 = inlined_call_operand.vmem [shape: f32[1,128], index: 8, kind: input, shape index: {}]
  %s9 = inlined_call_operand.vmem [shape: f32[64,128], index: 9, kind: output, shape index: {}]
  %s10 = sld [smem:[#allocation0]]
  $region46: #{sentence_module_forward.1} parent=0
    _
  %s12 = ssub.s32 1, %s10
  %s13 = scalar_select 0, %s12, %s10
  // Predicated region
  $region2: #{sentence_module_forward.1} parent=0 // pred_check
    _
  $region3: #{sentence_module_forward.1} parent=0 // pred_check_branch
    %15 = sbr.rel (0) target = $region5
  $region4: #{sentence_module_forward.1} parent=0 // pred_region
    _
  $region5: #{sentence_module_forward.1} parent=0 // pred_fallthru
    _
  // Predicated region
  $region6: #{sentence_module_forward.1} parent=0 // pred_check
    _
  $region7: #{sentence_module_forward.1} parent=0 // pred_check_branch
    %17 = sbr.rel (0) target = $region9
  $region8: #{sentence_module_forward.1} parent=0 // pred_region
    _
  $region9: #{sentence_module_forward.1} parent=0 // pred_fallthru
    _
  // Predicated region
  $region10: #{sentence_module_forward.1} parent=0 // pred_check
    _
  $region11: #{sentence_module_forward.1} parent=0 // pred_check_branch
    %19 = sbr.rel (0) target = $region13
  $region12: #{sentence_module_forward.1} parent=0 // pred_region
    _
  $region13: #{sentence_module_forward.1} parent=0 // pred_fallthru
    _
  // Predicated region
  $region14: #{sentence_module_forward.1} parent=0 // pred_check
    _
  $region15: #{sentence_module_forward.1} parent=0 // pred_check_branch
    %21 = sbr.rel (0) target = $region17
  $region16: #{sentence_module_forward.1} parent=0 // pred_region
    _
  $region17: #{sentence_module_forward.1} parent=0 // pred_fallthru
    _
  // Predicated region
  $region18: #{sentence_module_forward.1} parent=0 // pred_check
    _
  $region19: #{sentence_module_forward.1} parent=0 // pred_check_branch
    %23 = sbr.rel (0) target = $region21
  $region20: #{sentence_module_forward.1} parent=0 // pred_region
    _
  $region21: #{sentence_module_forward.1} parent=0 // pred_fallthru
    _
  // Predicated region
  $region22: #{sentence_module_forward.1} parent=0 // pred_check
    _
  $region23: #{sentence_module_forward.1} parent=0 // pred_check_branch
    %25 = sbr.rel (0) target = $region25
  $region24: #{sentence_module_forward.1} parent=0 // pred_region
    _
  $region25: #{sentence_module_forward.1} parent=0 // pred_fallthru
    _
  // Predicated region
  $region26: #{sentence_module_forward.1} parent=0 // pred_check
    _
  $region27: #{sentence_module_forward.1} parent=0 // pred_check_branch
    %27 = sbr.rel (0) target = $region29
  $region28: #{sentence_module_forward.1} parent=0 // pred_region
    _
  $region29: #{sentence_module_forward.1} parent=0 // pred_fallthru
    _
  // Predicated region
  $region30: #{sentence_module_forward.1} parent=0 // pred_check
    _
  $region31: #{sentence_module_forward.1} parent=0 // pred_check_branch
    %29 = sbr.rel (0) target = $region33
  $region32: #{sentence_module_forward.1} parent=0 // pred_region
    _
  $region33: #{sentence_module_forward.1} parent=0 // pred_fallthru
    _
  // Predicated region
  $region34: #{sentence_module_forward.1} parent=0 // pred_check
    _
  $region35: #{sentence_module_forward.1} parent=0 // pred_check_branch
    %31 = sbr.rel (0) target = $region37
  $region36: #{sentence_module_forward.1} parent=0 // pred_region
    _
  $region37: #{sentence_module_forward.1} parent=0 // pred_fallthru
    _
  %v33 = vld [vmem:[%s0] sm:$0xff]
  %v34 = vld [vmem:[%s0 + $0x8] sm:$0xff]
  %v35 = vld [vmem:[%s0 + $0x10] sm:$0xff]
  %v36 = vld [vmem:[%s0 + $0x18] sm:$0xff]
  %v37 = vld [vmem:[%s0 + $0x20] sm:$0xff]
  %v38 = vld [vmem:[%s0 + $0x28] sm:$0xff]
  %v39 = vld [vmem:[%s0 + $0x30] sm:$0xff]
  %v40 = vld [vmem:[%s0 + $0x38] sm:$0xff]
  %v41 = vlaneseq
  %v42 = vand.u32 %v41, 127
  %43 = vset.pattern.permute.xlu0 0
  %44 = vperm.xlu0 %43, %v33
  %v45 = vpop.permute.xlu0 %44
  %46 = vset.pattern.permute.xlu0 0
  %47 = vperm.xlu0 %46, %v34
  %v48 = vpop.permute.xlu0 %47
  %49 = vset.pattern.permute.xlu0 0
  %50 = vperm.xlu0 %49, %v35
  %v51 = vpop.permute.xlu0 %50
  %52 = vset.pattern.permute.xlu0 0
  %53 = vperm.xlu0 %52, %v36
  %v54 = vpop.permute.xlu0 %53
  %55 = vset.pattern.permute.xlu0 0
  %56 = vperm.xlu0 %55, %v37
  %v57 = vpop.permute.xlu0 %56
  %58 = vset.pattern.permute.xlu0 0
  %59 = vperm.xlu0 %58, %v38
  %v60 = vpop.permute.xlu0 %59
  %61 = vset.pattern.permute.xlu0 0
  %62 = vperm.xlu0 %61, %v39
  %v63 = vpop.permute.xlu0 %62
  %64 = vset.pattern.permute.xlu0 0
  %65 = vperm.xlu0 %64, %v40
  %v66 = vpop.permute.xlu0 %65
  %vm67 = vcmp.eq.s32.totalorder %v42, %v45
  %vm68 = vcmp.eq.s32.totalorder %v42, %v48
  %vm69 = vcmp.eq.s32.totalorder %v42, %v51
  %vm70 = vcmp.eq.s32.totalorder %v42, %v54
  %vm71 = vcmp.eq.s32.totalorder %v42, %v57
  %vm72 = vcmp.eq.s32.totalorder %v42, %v60
  %vm73 = vcmp.eq.s32.totalorder %v42, %v63
  %vm74 = vcmp.eq.s32.totalorder %v42, %v66
  %v75 = vsel %vm67, 1, 0
  %v76 = vsel %vm68, 1, 0
  %v77 = vsel %vm69, 1, 0
  %v78 = vsel %vm70, 1, 0
  %v79 = vsel %vm71, 1, 0
  %v80 = vsel %vm72, 1, 0
  %v81 = vsel %vm73, 1, 0
  %v82 = vsel %vm74, 1, 0
  %v83 = vcvt.s32.f32 %v75
  %v84 = vcvt.s32.f32 %v76
  %v85 = vcvt.s32.f32 %v77
  %v86 = vcvt.s32.f32 %v78
  %v87 = vcvt.s32.f32 %v79
  %v88 = vcvt.s32.f32 %v80
  %v89 = vcvt.s32.f32 %v81
  %v90 = vcvt.s32.f32 %v82
  %v91 = vpack.c.bf16 %v84, %v83
  %v92 = vpack.c.bf16 %v86, %v85
  %v93 = vpack.c.bf16 %v88, %v87
  %v94 = vpack.c.bf16 %v90, %v89
  %v95 = vld [vmem:[%s1] sm:$0xf]
  %v96 = vld [vmem:[%s1 + $0x4] sm:$0xf]
  %v97 = vld [vmem:[%s1 + $0x8] sm:$0xf]
  %v98 = vld [vmem:[%s1 + $0xc] sm:$0xf]
  %v99 = vld [vmem:[%s1 + $0x10] sm:$0xf]
  %v100 = vld [vmem:[%s1 + $0x14] sm:$0xf]
  %v101 = vld [vmem:[%s1 + $0x18] sm:$0x1]
  %v109 = vunpack.c.l.b16 %v95
  %v110 = vunpack.c.l.b16 %v96
  %v111 = vunpack.c.l.b16 %v97
  %v112 = vunpack.c.l.b16 %v98
  %v113 = vunpack.c.l.b16 %v99
  %v114 = vunpack.c.l.b16 %v100
  %v115 = vunpack.c.l.b16 %v101
  %v116 = vpack.c.b16 %v110, %v109
  %v117 = vpack.c.b16 %v112, %v111
  %v118 = vpack.c.b16 %v114, %v113
  %v119 = vpack.c.b16 %v115, %v115
  %vm123 = vcmask 408576
  %v125 = vsel %vm123, %v91, 0
  %v128 = vsel %vm123, %v92, 0
  %v131 = vsel %vm123, %v93, 0
  %v134 = vsel %vm123, %v94, 0
  %vm136 = vcmask 1040384
  %v138 = vsel %vm136, %v119, 0
  %140 = vmatpush.bf16.msra.mxu0 0
  %141 = vmatpush.bf16.msra.mxu0 0
  %142 = vmatpush.bf16.msra.mxu0 0
  %143 = vmatpush.bf16.msra.mxu0 0
  %144 = vmatpush.bf16.msra.mxu0 %v138
  %145 = vmatpush.bf16.msra.mxu0 %v118
  %146 = vmatpush.bf16.msra.mxu0 %v117
  %147 = vmatpush.bf16.msra.mxu0 %v116
  %148 = vmatmul.bf16.gmra.mxu0 %v125
  %v149 = vpop.f32.mrf.mxu0
  %v150 = vadd.f32 0.0, %v149
  %v151 = vpop.f32.mrf.mxu0
  %v152 = vadd.f32 0.0, %v151
  %153 = vmatmul.bf16.gmra.mxu0 %v128
  %v154 = vpop.f32.mrf.mxu0
  %v155 = vadd.f32 0.0, %v154
  %v156 = vpop.f32.mrf.mxu0
  %v157 = vadd.f32 0.0, %v156
  %158 = vmatmul.bf16.gmra.mxu0 %v131
  %v159 = vpop.f32.mrf.mxu0
  %v160 = vadd.f32 0.0, %v159
  %v161 = vpop.f32.mrf.mxu0
  %v162 = vadd.f32 0.0, %v161
  %163 = vmatmul.bf16.gmra.mxu0 %v134
  %v164 = vpop.f32.mrf.mxu0
  %v165 = vadd.f32 0.0, %v164
  %v166 = vpop.f32.mrf.mxu0
  %v167 = vadd.f32 0.0, %v166
  %168 = vdwg.mxu0
  %v169 = vpack.c.bf16 %v152, %v150
  %v170 = vpack.c.bf16 %v157, %v155
  %v171 = vpack.c.bf16 %v162, %v160
  %v172 = vpack.c.bf16 %v167, %v165
  %v173 = vld [vmem:[%s2] sm:$0xf]
  %v174 = vld [vmem:[%s2 + $0x4] sm:$0xf]
  %v175 = vld [vmem:[%s2 + $0x8] sm:$0xf]
  %v176 = vld [vmem:[%s2 + $0xc] sm:$0xf]
  %v177 = vld [vmem:[%s4] sm:$0x1]
  %v179 = vperm.slane %v177, 0
  %v185 = vunpack.c.l.b16 %v173
  %v186 = vunpack.c.l.b16 %v174
  %v187 = vunpack.c.l.b16 %v175
  %v188 = vunpack.c.l.b16 %v176
  %v189 = vpack.c.b16 %v186, %v185
  %v190 = vpack.c.b16 %v188, %v187
  %vm193 = vcmask 261120
  %v195 = vsel %vm193, %v169, 0
  %v198 = vsel %vm193, %v170, 0
  %v201 = vsel %vm193, %v171, 0
  %v204 = vsel %vm193, %v172, 0
  %206 = vmatpush.bf16.msra.mxu0 0
  %207 = vmatpush.bf16.msra.mxu0 0
  %208 = vmatpush.bf16.msra.mxu0 0
  %209 = vmatpush.bf16.msra.mxu0 0
  %210 = vmatpush.bf16.msra.mxu0 0
  %211 = vmatpush.bf16.msra.mxu0 0
  %212 = vmatpush.bf16.msra.mxu0 %v190
  %213 = vmatpush.bf16.msra.mxu0 %v189
  %214 = vmatmul.bf16.gmra.mxu0 %v195
  %v215 = vpop.f32.mrf.mxu0
  %v216 = vadd.f32 %v179, %v215
  %v217 = vpop.f32.mrf.mxu0
  %v218 = vadd.f32 %v179, %v217
  %219 = vmatmul.bf16.gmra.mxu0 %v198
  %v220 = vpop.f32.mrf.mxu0
  %v221 = vadd.f32 %v179, %v220
  %v222 = vpop.f32.mrf.mxu0
  %v223 = vadd.f32 %v179, %v222
  %224 = vmatmul.bf16.gmra.mxu0 %v201
  %v225 = vpop.f32.mrf.mxu0
  %v226 = vadd.f32 %v179, %v225
  %v227 = vpop.f32.mrf.mxu0
  %v228 = vadd.f32 %v179, %v227
  %229 = vmatmul.bf16.gmra.mxu0 %v204
  %v230 = vpop.f32.mrf.mxu0
  %v231 = vadd.f32 %v179, %v230
  %v232 = vpop.f32.mrf.mxu0
  %v233 = vadd.f32 %v179, %v232
  %234 = vdwg.mxu0
  %v235 = vld [vmem:[%s3] sm:$0xf]
  %v236 = vld [vmem:[%s3 + $0x4] sm:$0xf]
  %v237 = vld [vmem:[%s3 + $0x8] sm:$0xf]
  %v238 = vld [vmem:[%s3 + $0xc] sm:$0xf]
  %vm239 = vcmp.ge.s32.totalorder %v42, 64
  %vm240 = vcmp.lt.s32.totalorder %v42, 96
  %vm241 = vmand %vm239, %vm240
  %v242 = vld [vmem:[%s5] sm:$0xff]
  %v243 = vld [vmem:[%s6] sm:$0xff]
  %v244 = vpack.c.bf16 %v242, %v242
  %v249 = vunpack.c.l.b16 %v235
  %v250 = vunpack.c.l.b16 %v236
  %v251 = vunpack.c.l.b16 %v237
  %v252 = vunpack.c.l.b16 %v238
  %v253 = vpack.c.b16 %v250, %v249
  %v254 = vpack.c.b16 %v252, %v251
  %v258 = vsel %vm193, %v244, 0
  %260 = vmatpush.bf16.msra.mxu0 0
  %261 = vmatpush.bf16.msra.mxu0 0
  %262 = vmatpush.bf16.msra.mxu0 0
  %263 = vmatpush.bf16.msra.mxu0 0
  %264 = vmatpush.bf16.msra.mxu0 0
  %265 = vmatpush.bf16.msra.mxu0 0
  %266 = vmatpush.bf16.msra.mxu0 %v254
  %267 = vmatpush.bf16.msra.mxu0 %v253
  %268 = vmatmul.bf16.gmra.mxu0 %v258
  %v269 = vpop.f32.mrf.mxu0
  %v270 = vadd.f32 0.0, %v269
  %v271 = vpop.f32.mrf.mxu0
  %272 = vdwg.mxu0
  %v273 = vadd.f32 %v216, %v270
  %v274 = vmul.f32 %v273, 0.5
  %v275 = vsel %vm241, %v273, %v274
  %v276 = vtanh.pop %v275
  %v277 = vmul.f32 %v276, 0.5
  %v278 = vadd.f32 %v277, 0.5
  %v279 = vsel %vm241, %v276, %v278
  %281 = vrot.lane.b32.xlu0 %v243, 32
  %v282 = vpop.permute.xlu0 %281
  %v284 = vmul.f32 %v279, %v282
  %286 = vrot.lane.b32.xlu0 %v279, 64
  %v287 = vpop.permute.xlu0 %286
  %v289 = vmul.f32 %v279, %v287
  %291 = vrot.lane.b32.xlu0 %v289, 32
  %v292 = vpop.permute.xlu0 %291
  %v294 = vadd.f32 %v284, %v292
  %v295 = vtanh.pop %v294
  %297 = vrot.lane.b32.xlu0 %v295, 64
  %v298 = vpop.permute.xlu0 %297
  %v300 = vmul.f32 %v279, %v298
  %302 = vrot.lane.b32.xlu0 %v300, 32
  %v303 = vpop.permute.xlu0 %302
  %305 = vst.msk [vmem:[#allocation2] sm:$0xff] %vm193, %v303
  %v306 = vpack.c.bf16 %v300, %v300
  %308 = vrot.lane.b32.xlu0 %v306, 32
  %v309 = vpop.permute.xlu0 %308
  %v311 = vsel %vm193, %v309, 0
  %313 = vmatpush.bf16.msra.mxu0 0
  %314 = vmatpush.bf16.msra.mxu0 0
  %315 = vmatpush.bf16.msra.mxu0 0
  %316 = vmatpush.bf16.msra.mxu0 0
  %317 = vmatpush.bf16.msra.mxu0 0
  %318 = vmatpush.bf16.msra.mxu0 0
  %319 = vmatpush.bf16.msra.mxu0 %v254
  %320 = vmatpush.bf16.msra.mxu0 %v253
  %321 = vmatmul.bf16.gmra.mxu0 %v311
  %v322 = vpop.f32.mrf.mxu0
  %v323 = vadd.f32 0.0, %v322
  %v324 = vpop.f32.mrf.mxu0
  %325 = vdwg.mxu0
  %v326 = vadd.f32 %v218, %v323
  %v327 = vmul.f32 %v326, 0.5
  %v328 = vsel %vm241, %v326, %v327
  %v329 = vtanh.pop %v328
  %v330 = vmul.f32 %v329, 0.5
  %v331 = vadd.f32 %v330, 0.5
  %v332 = vsel %vm241, %v329, %v331
  %v333 = vmul.f32 %v332, %v294
  %335 = vrot.lane.b32.xlu0 %v332, 64
  %v336 = vpop.permute.xlu0 %335
  %v338 = vmul.f32 %v332, %v336
  %340 = vrot.lane.b32.xlu0 %v338, 32
  %v341 = vpop.permute.xlu0 %340
  %v343 = vadd.f32 %v333, %v341
  %v344 = vtanh.pop %v343
  %346 = vrot.lane.b32.xlu0 %v344, 64
  %v347 = vpop.permute.xlu0 %346
  %v349 = vmul.f32 %v332, %v347
  %351 = vrot.lane.b32.xlu0 %v349, 32
  %v352 = vpop.permute.xlu0 %351
  %354 = vst.msk [vmem:[#allocation2 + $0x8] sm:$0xff] %vm193, %v352
  %v355 = vpack.c.bf16 %v349, %v349
  %357 = vrot.lane.b32.xlu0 %v355, 32
  %v358 = vpop.permute.xlu0 %357
  %v360 = vsel %vm193, %v358, 0
  %362 = vmatpush.bf16.msra.mxu0 0
  %363 = vmatpush.bf16.msra.mxu0 0
  %364 = vmatpush.bf16.msra.mxu0 0
  %365 = vmatpush.bf16.msra.mxu0 0
  %366 = vmatpush.bf16.msra.mxu0 0
  %367 = vmatpush.bf16.msra.mxu0 0
  %368 = vmatpush.bf16.msra.mxu0 %v254
  %369 = vmatpush.bf16.msra.mxu0 %v253
  %370 = vmatmul.bf16.gmra.mxu0 %v360
  %v371 = vpop.f32.mrf.mxu0
  %v372 = vadd.f32 0.0, %v371
  %v373 = vpop.f32.mrf.mxu0
  %374 = vdwg.mxu0
  %v375 = vadd.f32 %v221, %v372
  %v376 = vmul.f32 %v375, 0.5
  %v377 = vsel %vm241, %v375, %v376
  %v378 = vtanh.pop %v377
  %v379 = vmul.f32 %v378, 0.5
  %v380 = vadd.f32 %v379, 0.5
  %v381 = vsel %vm241, %v378, %v380
  %v382 = vmul.f32 %v381, %v343
  %384 = vrot.lane.b32.xlu0 %v381, 64
  %v385 = vpop.permute.xlu0 %384
  %v387 = vmul.f32 %v381, %v385
  %389 = vrot.lane.b32.xlu0 %v387, 32
  %v390 = vpop.permute.xlu0 %389
  %v392 = vadd.f32 %v382, %v390
  %v393 = vtanh.pop %v392
  %395 = vrot.lane.b32.xlu0 %v393, 64
  %v396 = vpop.permute.xlu0 %395
  %v398 = vmul.f32 %v381, %v396
  %400 = vrot.lane.b32.xlu0 %v398, 32
  %v401 = vpop.permute.xlu0 %400
  %403 = vst.msk [vmem:[#allocation2 + $0x10] sm:$0xff] %vm193, %v401
  %v404 = vpack.c.bf16 %v398, %v398
  %406 = vrot.lane.b32.xlu0 %v404, 32
  %v407 = vpop.permute.xlu0 %406
  %v409 = vsel %vm193, %v407, 0
  %411 = vmatpush.bf16.msra.mxu0 0
  %412 = vmatpush.bf16.msra.mxu0 0
  %413 = vmatpush.bf16.msra.mxu0 0
  %414 = vmatpush.bf16.msra.mxu0 0
  %415 = vmatpush.bf16.msra.mxu0 0
  %416 = vmatpush.bf16.msra.mxu0 0
  %417 = vmatpush.bf16.msra.mxu0 %v254
  %418 = vmatpush.bf16.msra.mxu0 %v253
  %419 = vmatmul.bf16.gmra.mxu0 %v409
  %v420 = vpop.f32.mrf.mxu0
  %v421 = vadd.f32 0.0, %v420
  %v422 = vpop.f32.mrf.mxu0
  %423 = vdwg.mxu0
  %v424 = vadd.f32 %v223, %v421
  %v425 = vmul.f32 %v424, 0.5
  %v426 = vsel %vm241, %v424, %v425
  %v427 = vtanh.pop %v426
  %v428 = vmul.f32 %v427, 0.5
  %v429 = vadd.f32 %v428, 0.5
  %v430 = vsel %vm241, %v427, %v429
  %v431 = vmul.f32 %v430, %v392
  %433 = vrot.lane.b32.xlu0 %v430, 64
  %v434 = vpop.permute.xlu0 %433
  %v436 = vmul.f32 %v430, %v434
  %438 = vrot.lane.b32.xlu0 %v436, 32
  %v439 = vpop.permute.xlu0 %438
  %v441 = vadd.f32 %v431, %v439
  %v442 = vtanh.pop %v441
  %444 = vrot.lane.b32.xlu0 %v442, 64
  %v445 = vpop.permute.xlu0 %444
  %v447 = vmul.f32 %v430, %v445
  %449 = vrot.lane.b32.xlu0 %v447, 32
  %v450 = vpop.permute.xlu0 %449
  %452 = vst.msk [vmem:[#allocation2 + $0x18] sm:$0xff] %vm193, %v450
  %v453 = vpack.c.bf16 %v447, %v447
  %455 = vrot.lane.b32.xlu0 %v453, 32
  %v456 = vpop.permute.xlu0 %455
  %v458 = vsel %vm193, %v456, 0
  %460 = vmatpush.bf16.msra.mxu0 0
  %461 = vmatpush.bf16.msra.mxu0 0
  %462 = vmatpush.bf16.msra.mxu0 0
  %463 = vmatpush.bf16.msra.mxu0 0
  %464 = vmatpush.bf16.msra.mxu0 0
  %465 = vmatpush.bf16.msra.mxu0 0
  %466 = vmatpush.bf16.msra.mxu0 %v254
  %467 = vmatpush.bf16.msra.mxu0 %v253
  %468 = vmatmul.bf16.gmra.mxu0 %v458
  %v469 = vpop.f32.mrf.mxu0
  %v470 = vadd.f32 0.0, %v469
  %v471 = vpop.f32.mrf.mxu0
  %472 = vdwg.mxu0
  %v473 = vadd.f32 %v226, %v470
  %v474 = vmul.f32 %v473, 0.5
  %v475 = vsel %vm241, %v473, %v474
  %v476 = vtanh.pop %v475
  %v477 = vmul.f32 %v476, 0.5
  %v478 = vadd.f32 %v477, 0.5
  %v479 = vsel %vm241, %v476, %v478
  %v480 = vmul.f32 %v479, %v441
  %482 = vrot.lane.b32.xlu0 %v479, 64
  %v483 = vpop.permute.xlu0 %482
  %v485 = vmul.f32 %v479, %v483
  %487 = vrot.lane.b32.xlu0 %v485, 32
  %v488 = vpop.permute.xlu0 %487
  %v490 = vadd.f32 %v480, %v488
  %v491 = vtanh.pop %v490
  %493 = vrot.lane.b32.xlu0 %v491, 64
  %v494 = vpop.permute.xlu0 %493
  %v496 = vmul.f32 %v479, %v494
  %498 = vrot.lane.b32.xlu0 %v496, 32
  %v499 = vpop.permute.xlu0 %498
  %501 = vst.msk [vmem:[#allocation2 + $0x20] sm:$0xff] %vm193, %v499
  %v502 = vpack.c.bf16 %v496, %v496
  %504 = vrot.lane.b32.xlu0 %v502, 32
  %v505 = vpop.permute.xlu0 %504
  %v507 = vsel %vm193, %v505, 0
  %509 = vmatpush.bf16.msra.mxu0 0
  %510 = vmatpush.bf16.msra.mxu0 0
  %511 = vmatpush.bf16.msra.mxu0 0
  %512 = vmatpush.bf16.msra.mxu0 0
  %513 = vmatpush.bf16.msra.mxu0 0
  %514 = vmatpush.bf16.msra.mxu0 0
  %515 = vmatpush.bf16.msra.mxu0 %v254
  %516 = vmatpush.bf16.msra.mxu0 %v253
  %517 = vmatmul.bf16.gmra.mxu0 %v507
  %v518 = vpop.f32.mrf.mxu0
  %v519 = vadd.f32 0.0, %v518
  %v520 = vpop.f32.mrf.mxu0
  %521 = vdwg.mxu0
  %v522 = vadd.f32 %v228, %v519
  %v523 = vmul.f32 %v522, 0.5
  %v524 = vsel %vm241, %v522, %v523
  %v525 = vtanh.pop %v524
  %v526 = vmul.f32 %v525, 0.5
  %v527 = vadd.f32 %v526, 0.5
  %v528 = vsel %vm241, %v525, %v527
  %v529 = vmul.f32 %v528, %v490
  %531 = vrot.lane.b32.xlu0 %v528, 64
  %v532 = vpop.permute.xlu0 %531
  %v534 = vmul.f32 %v528, %v532
  %536 = vrot.lane.b32.xlu0 %v534, 32
  %v537 = vpop.permute.xlu0 %536
  %v539 = vadd.f32 %v529, %v537
  %v540 = vtanh.pop %v539
  %542 = vrot.lane.b32.xlu0 %v540, 64
  %v543 = vpop.permute.xlu0 %542
  %v545 = vmul.f32 %v528, %v543
  %547 = vrot.lane.b32.xlu0 %v545, 32
  %v548 = vpop.permute.xlu0 %547
  %550 = vst.msk [vmem:[#allocation2 + $0x28] sm:$0xff] %vm193, %v548
  %v551 = vpack.c.bf16 %v545, %v545
  %553 = vrot.lane.b32.xlu0 %v551, 32
  %v554 = vpop.permute.xlu0 %553
  %v556 = vsel %vm193, %v554, 0
  %558 = vmatpush.bf16.msra.mxu0 0
  %559 = vmatpush.bf16.msra.mxu0 0
  %560 = vmatpush.bf16.msra.mxu0 0
  %561 = vmatpush.bf16.msra.mxu0 0
  %562 = vmatpush.bf16.msra.mxu0 0
  %563 = vmatpush.bf16.msra.mxu0 0
  %564 = vmatpush.bf16.msra.mxu0 %v254
  %565 = vmatpush.bf16.msra.mxu0 %v253
  %566 = vmatmul.bf16.gmra.mxu0 %v556
  %v567 = vpop.f32.mrf.mxu0
  %v568 = vadd.f32 0.0, %v567
  %v569 = vpop.f32.mrf.mxu0
  %570 = vdwg.mxu0
  %v571 = vadd.f32 %v231, %v568
  %v572 = vmul.f32 %v571, 0.5
  %v573 = vsel %vm241, %v571, %v572
  %v574 = vtanh.pop %v573
  %v575 = vmul.f32 %v574, 0.5
  %v576 = vadd.f32 %v575, 0.5
  %v577 = vsel %vm241, %v574, %v576
  %v578 = vmul.f32 %v577, %v539
  %580 = vrot.lane.b32.xlu0 %v577, 64
  %v581 = vpop.permute.xlu0 %580
  %v583 = vmul.f32 %v577, %v581
  %585 = vrot.lane.b32.xlu0 %v583, 32
  %v586 = vpop.permute.xlu0 %585
  %v588 = vadd.f32 %v578, %v586
  %v589 = vtanh.pop %v588
  %591 = vrot.lane.b32.xlu0 %v589, 64
  %v592 = vpop.permute.xlu0 %591
  %v594 = vmul.f32 %v577, %v592
  %596 = vrot.lane.b32.xlu0 %v594, 32
  %v597 = vpop.permute.xlu0 %596
  %599 = vst.msk [vmem:[#allocation2 + $0x30] sm:$0xff] %vm193, %v597
  %v600 = vpack.c.bf16 %v594, %v594
  %602 = vrot.lane.b32.xlu0 %v600, 32
  %v603 = vpop.permute.xlu0 %602
  %v605 = vsel %vm193, %v603, 0
  %607 = vmatpush.bf16.msra.mxu0 0
  %608 = vmatpush.bf16.msra.mxu0 0
  %609 = vmatpush.bf16.msra.mxu0 0
  %610 = vmatpush.bf16.msra.mxu0 0
  %611 = vmatpush.bf16.msra.mxu0 0
  %612 = vmatpush.bf16.msra.mxu0 0
  %613 = vmatpush.bf16.msra.mxu0 %v254
  %614 = vmatpush.bf16.msra.mxu0 %v253
  %615 = vmatmul.bf16.gmra.mxu0 %v605
  %v616 = vpop.f32.mrf.mxu0
  %v617 = vadd.f32 0.0, %v616
  %v618 = vpop.f32.mrf.mxu0
  %619 = vdwg.mxu0
  %v620 = vadd.f32 %v233, %v617
  %v621 = vmul.f32 %v620, 0.5
  %v622 = vsel %vm241, %v620, %v621
  %v623 = vtanh.pop %v622
  %v624 = vmul.f32 %v623, 0.5
  %v625 = vadd.f32 %v624, 0.5
  %v626 = vsel %vm241, %v623, %v625
  %v627 = vmul.f32 %v626, %v588
  %629 = vrot.lane.b32.xlu0 %v626, 64
  %v630 = vpop.permute.xlu0 %629
  %v632 = vmul.f32 %v626, %v630
  %634 = vrot.lane.b32.xlu0 %v632, 32
  %v635 = vpop.permute.xlu0 %634
  %v637 = vadd.f32 %v627, %v635
  %v638 = vtanh.pop %v637
  %640 = vrot.lane.b32.xlu0 %v638, 64
  %v641 = vpop.permute.xlu0 %640
  %v643 = vmul.f32 %v626, %v641
  %645 = vrot.lane.b32.xlu0 %v643, 32
  %v646 = vpop.permute.xlu0 %645
  %648 = vst.msk [vmem:[#allocation2 + $0x38] sm:$0xff] %vm193, %v646
  %v649 = vld [vmem:[#allocation2] sm:$0xff]
  %v650 = vld [vmem:[#allocation2 + $0x8] sm:$0xff]
  %v651 = vld [vmem:[#allocation2 + $0x10] sm:$0xff]
  %v652 = vld [vmem:[#allocation2 + $0x18] sm:$0xff]
  %v653 = vld [vmem:[#allocation2 + $0x20] sm:$0xff]
  %v654 = vld [vmem:[#allocation2 + $0x28] sm:$0xff]
  %v655 = vld [vmem:[#allocation2 + $0x30] sm:$0xff]
  %v656 = vld [vmem:[#allocation2 + $0x38] sm:$0xff]
  %v657 = vpack.c.bf16 %v650, %v649
  %v658 = vpack.c.bf16 %v652, %v651
  %v659 = vpack.c.bf16 %v654, %v653
  %v660 = vpack.c.bf16 %v656, %v655
  %v661 = vld [vmem:[%s7] sm:$0xf]
  %v662 = vld [vmem:[%s7 + $0x4] sm:$0xf]
  %v663 = vld [vmem:[%s7 + $0x8] sm:$0xf]
  %v664 = vld [vmem:[%s7 + $0xc] sm:$0xf]
  %v665 = vld [vmem:[%s8] sm:$0x1]
  %v667 = vperm.slane %v665, 0
  %v673 = vunpack.c.l.b16 %v661
  %v674 = vunpack.c.l.b16 %v662
  %v675 = vunpack.c.l.b16 %v663
  %v676 = vunpack.c.l.b16 %v664
  %v677 = vpack.c.b16 %v674, %v673
  %v678 = vpack.c.b16 %v676, %v675
  %v682 = vsel %vm193, %v657, 0
  %v685 = vsel %vm193, %v658, 0
  %v688 = vsel %vm193, %v659, 0
  %v691 = vsel %vm193, %v660, 0
  %693 = vmatpush.bf16.msra.mxu0 0
  %694 = vmatpush.bf16.msra.mxu0 0
  %695 = vmatpush.bf16.msra.mxu0 0
  %696 = vmatpush.bf16.msra.mxu0 0
  %697 = vmatpush.bf16.msra.mxu0 0
  %698 = vmatpush.bf16.msra.mxu0 0
  %699 = vmatpush.bf16.msra.mxu0 %v678
  %700 = vmatpush.bf16.msra.mxu0 %v677
  %701 = vmatmul.bf16.gmra.mxu0 %v682
  %v702 = vpop.f32.mrf.mxu0
  %v703 = vadd.f32 %v667, %v702
  %v704 = vpop.f32.mrf.mxu0
  %v705 = vadd.f32 %v667, %v704
  %706 = vmatmul.bf16.gmra.mxu0 %v685
  %v707 = vpop.f32.mrf.mxu0
  %v708 = vadd.f32 %v667, %v707
  %v709 = vpop.f32.mrf.mxu0
  %v710 = vadd.f32 %v667, %v709
  %711 = vmatmul.bf16.gmra.mxu0 %v688
  %v712 = vpop.f32.mrf.mxu0
  %v713 = vadd.f32 %v667, %v712
  %v714 = vpop.f32.mrf.mxu0
  %v715 = vadd.f32 %v667, %v714
  %716 = vmatmul.bf16.gmra.mxu0 %v691
  %v717 = vpop.f32.mrf.mxu0
  %v718 = vadd.f32 %v667, %v717
  %v719 = vpop.f32.mrf.mxu0
  %v720 = vadd.f32 %v667, %v719
  %721 = vdwg.mxu0
  %722 = vst [vmem:[%s9] sm:$0xff] %v703
  %723 = vst [vmem:[%s9 + $0x8] sm:$0xff] %v705
  %724 = vst [vmem:[%s9 + $0x10] sm:$0xff] %v708
  %725 = vst [vmem:[%s9 + $0x18] sm:$0xff] %v710
  %726 = vst [vmem:[%s9 + $0x20] sm:$0xff] %v713
  %727 = vst [vmem:[%s9 + $0x28] sm:$0xff] %v715
  %728 = vst [vmem:[%s9 + $0x30] sm:$0xff] %v718
  %729 = vst [vmem:[%s9 + $0x38] sm:$0xff] %v720
  // Predicated region
  $region38: #{sentence_module_forward.1} parent=0 // pred_check
    _
  $region39: #{sentence_module_forward.1} parent=0 // pred_check_branch
    %731 = sbr.rel (0) target = $region41
  $region40: #{sentence_module_forward.1} parent=0 // pred_region
    _
  $region41: #{sentence_module_forward.1} parent=0 // pred_fallthru
    _
  // Predicated region
  $region42: #{sentence_module_forward.1} parent=0 // pred_check
    _
  $region43: #{sentence_module_forward.1} parent=0 // pred_check_branch
    %733 = sbr.rel (0) target = $region45
  $region44: #{sentence_module_forward.1} parent=0 // pred_region
    _
  $region45: #{sentence_module_forward.1} parent=0 // pred_fallthru
    _

</llo_original>
